<compile_context>
chip_gen: v5e
topology: v5e:2x2
jax: 0.10.0
libtpu: 0.0.40
codegen_flags: <defaults>
</compile_context>

<pallas_src>
import dataclasses
import functools

import jax
import jax.numpy as jnp
from jax.experimental import pallas as pl
from jax.experimental.pallas import tpu as pltpu


@dataclasses.dataclass
class TrainingConfig:
    horizon: int = 2


def _detect_vmem_bytes() -> int:
    """Physical VMEM per core; conservative fallback if detection fails."""
    try:
        info = pltpu.get_tpu_info()
        for attr in ("vmem_capacity_bytes", "vmem_bytes", "vmem_size_bytes"):
            v = getattr(info, attr, None)
            if v:
                return int(v)
    except Exception:
        pass
    return 64 << 20  # v7x-sized fallback: safe everywhere


# ---------------------------------------------------------------------------
# Kernel (fused means + cov projection; one grid step = tb time steps)
# ---------------------------------------------------------------------------
def _projector_kernel(m_ref, in_ref, cov_ref, p_ref, w2t_ref, bias_ref,
                      eps_eye_ref, means_out_ref, cov_out_ref, *,
                      idempotent_shortcut: bool):
    p = p_ref[...]                                       # resident (D, D), symmetric

    # ---- means: two resident-weight MXU dots + bias ------------------------
    #   means @ P.T + inputs @ W2.T + bias   (P symmetric -> P.T == P)
    means_out_ref[...] = (
        jnp.dot(m_ref[...], p, preferred_element_type=jnp.float32)
        + jnp.dot(in_ref[...], w2t_ref[...], preferred_element_type=jnp.float32)
        + bias_ref[...]
    )

    # ---- covariance ---------------------------------------------------------
    #   c1 = cov @ P ; c2 = c1 @ P ; cov_proj = c1 @ c2 + eps * I  (per step)
    # cov arrives as a lane-dense 2D slab (tb*D, D): shared-RHS dots need no
    # in-kernel ref reshape.
    tbd, d = cov_ref.shape
    tb = tbd // d
    c1 = jnp.dot(cov_ref[...], p, preferred_element_type=jnp.float32)      # (tb*D, D)
    if idempotent_shortcut:
        c2 = c1                                       # P @ P == P (mathematically)
    else:
        c2 = jnp.dot(c1, p, preferred_element_type=jnp.float32)            # (tb*D, D)
    cp = jnp.einsum(
        "tij,tjk->tik",
        c1.reshape(tb, d, d),
        c2.reshape(tb, d, d),
        preferred_element_type=jnp.float32,
    )
    cov_out_ref[...] = (cp + eps_eye_ref[...]).reshape(tbd, d)


# ---------------------------------------------------------------------------
# Module wrapper (parameter setup = glue, hot path = one Pallas call)
# ---------------------------------------------------------------------------
class Projector:
    def __init__(self, config: TrainingConfig, A, B, b, *,
                 idempotent_shortcut: bool = False):
        self.config = config
        self.A = jnp.asarray(A, jnp.float32)
        self.B = jnp.asarray(B, jnp.float32)
        self.b = jnp.asarray(b, jnp.float32)
        # Off by default: enabling saves one (tb*D,D)@(D,D) dot via P@P == P but
        # differs from the reference by pinv/f32 roundoff amplified through c1@c1.
        self.idempotent_shortcut = idempotent_shortcut

        D = self.B.shape[1]
        self.D = D
        self.B_inv = jnp.linalg.pinv(self.B)                               # (D, m)
        P = jnp.eye(D, dtype=jnp.float32) - self.B_inv @ self.B            # (D, D)
        # Orthogonal projector -> symmetric; symmetrize so P.T == P bit-exactly
        # and a single resident (D, D) operand serves the means AND cov paths.
        self.proj_space = 0.5 * (P + P.T)

        # fc_adj2.weight = -B_inv @ A  -> x @ W2.T ; bias = B_inv @ b
        self.W2 = -self.B_inv @ self.A                                     # (D, D)
        self.bias2 = self.B_inv @ self.b                                   # (D,)

        # Hoisted, kernel-ready parameters.
        self.W2T = jnp.asarray(self.W2.T)                                  # (D, D)
        self.bias_row = self.bias2.reshape(1, D)                           # (1, D)
        self.eps_eye = jnp.float32(1e-6) * jnp.eye(D, dtype=jnp.float32)   # (D, D)

        # --- VMEM budgeting (chip-aware) -------------------------------------
        vmem_cap = _detect_vmem_bytes()
        # 48 MiB on 64-MiB parts (v7x), 96 MiB on 128-MiB parts (v5e/v6e).
        self._vmem_limit_bytes = int(min((3 * vmem_cap) // 4, 96 << 20))
        # Target cov block size: amortizes the ~0.35 us per-step overhead while
        # leaving room for the ~7 concurrently live cov-sized buffers.
        self._cov_block_cap = (4 << 20) if vmem_cap <= (64 << 20) else (8 << 20)
        # Residents (P, W2.T, eps*I, bias), each potentially double-buffered.
        self._resident_bytes = 2 * (3 * D * D + D) * 4

    def _pick_block_t(self, T: int, D: int) -> int:
        """Time steps per grid step, sized against the full per-step live set."""
        bytes_per_step = 4 * D * D                      # one f32 DxD cov matrix
        usable = max(self._vmem_limit_bytes - self._resident_bytes, 1 << 20)
        # ~7 live cov-sized buffers per step: 2x input + 2x output double
        # buffers + c1 + c2 + cp temporaries.
        block_budget = min(usable // 7, self._cov_block_cap)
        tb = max(1, block_budget // bytes_per_step)
        # Keep >= ~8 grid steps when T allows: pipelining + megacore sharding.
        if T >= 64:
            tb = min(tb, pl.cdiv(T, 8))
        tb = min(tb, T)
        if tb >= T:
            return T
        if tb >= 8:
            # 8-row (sublane) alignment for the (tb, D) means blocks.
            tb = (tb // 8) * 8
        # tb < 8 only for very large D where a single step already meets the
        # budget; do NOT round up (an 8-row floor would overshoot VMEM).
        return max(1, tb)

    def __call__(self, inputs, means, cov):
        T = inputs.shape[0]
        H = self.config.horizon
        D = self.D

        means2 = means.reshape(-1, H * means.shape[1])       # (T, D)
        inputs2 = inputs.reshape(T, -1)                      # (T, D)
        cov2 = cov.reshape(T * D, D)                         # lane-dense 2D slab

        tb = self._pick_block_t(T, D)
        grid = (pl.cdiv(T, tb),)

        kernel = functools.partial(
            _projector_kernel, idempotent_shortcut=self.idempotent_shortcut)

        means_adj, cov_proj = pl.pallas_call(
            kernel,
            out_shape=(
                jax.ShapeDtypeStruct((T, D), jnp.float32),
                jax.ShapeDtypeStruct((T * D, D), jnp.float32),
            ),
            grid=grid,
            in_specs=[
                pl.BlockSpec((tb, D), lambda i: (i, 0)),          # means block
                pl.BlockSpec((tb, D), lambda i: (i, 0)),          # inputs block
                pl.BlockSpec((tb * D, D), lambda i: (i, 0)),      # cov slab block
                pl.BlockSpec((D, D), lambda i: (0, 0)),           # P (resident)
                pl.BlockSpec((D, D), lambda i: (0, 0)),           # W2.T (resident)
                pl.BlockSpec((1, D), lambda i: (0, 0)),           # bias row (resident)
                pl.BlockSpec((D, D), lambda i: (0, 0)),           # eps * I (resident)
            ],
            out_specs=(
                pl.BlockSpec((tb, D), lambda i: (i, 0)),
                pl.BlockSpec((tb * D, D), lambda i: (i, 0)),
            ),
            compiler_params=pltpu.CompilerParams(
                dimension_semantics=("parallel",),
                vmem_limit_bytes=self._vmem_limit_bytes,
            ),
        )(means2, inputs2, cov2, self.proj_space, self.W2T, self.bias_row,
          self.eps_eye)

        means_adj = means_adj.reshape(T, H, D // H)
        cov_proj = cov_proj.reshape(T, D, D)
        return means_adj, cov_proj


# ---------------------------------------------------------------------------
# Pure-JAX reference (mirrors the PyTorch module semantics)
# ---------------------------------------------------------------------------
def _reference(proj: Projector, inputs, means, cov):
    T = inputs.shape[0]
    H = proj.config.horizon
    means2 = means.reshape(-1, H * means.shape[1])
    D = means2.shape[1]
    cov2 = cov.reshape(-1, D, D)
    inp2 = inputs.reshape(T, -1)
    P = proj.proj_space
    c1 = cov2 @ P.T                       # fc_cholesky_adj
    c2 = c1 @ P                           # fc_cholesky_adj2
    cp = c1 @ c2 + 1e-6 * jnp.eye(D, dtype=jnp.float32)
    m = means2 @ P.T + inp2 @ proj.W2.T + proj.bias2
    return m.reshape(T, H, D // H), cp


if __name__ == "__main__":
    key = jax.random.PRNGKey(0)
    T, H, M, m_con = 8, 2, 4, 3          # time steps, horizon, mean dim, #constraints
    D = H * M                             # flattened mean / constraint dimension

    k1, k2, k3, k4, k5, k6 = jax.random.split(key, 6)
    A = jax.random.normal(k1, (m_con, D), dtype=jnp.float32)
    B = jax.random.normal(k2, (m_con, D), dtype=jnp.float32)
    b = jax.random.normal(k3, (m_con,), dtype=jnp.float32)

    inputs = jax.random.normal(k4, (T, H, M), dtype=jnp.float32)     # (T, P, Q), P*Q = D
    means = jax.random.normal(k5, (T * H, M), dtype=jnp.float32)     # reshaped to (T, D)
    cov = jax.random.normal(k6, (T, D, D), dtype=jnp.float32)        # (T, D, D)

    config = TrainingConfig(horizon=H)
    proj = Projector(config, A, B, b)

    means_adj, cov_proj = proj(inputs, means, cov)
    means_adj = jax.block_until_ready(means_adj)
    cov_proj = jax.block_until_ready(cov_proj)

    ref_means, ref_cov = _reference(proj, inputs, means, cov)
    assert means_adj.shape == (T, H, M)
    assert cov_proj.shape == (T, D, D)
    assert jnp.allclose(means_adj, ref_means, atol=1e-4, rtol=1e-4)
    assert jnp.allclose(cov_proj, ref_cov, atol=1e-4, rtol=1e-4)

    print("KERNEL_OK")
</pallas_src>

<mosaic_0001>
module attributes {stable_mosaic.version = 11 : i64} {
  func.func @_projector_kernel(%arg0: i32, %arg1: memref<8x8xf32, #tpu.memory_space<vmem>>, %arg2: memref<8x8xf32, #tpu.memory_space<vmem>>, %arg3: memref<64x8xf32, #tpu.memory_space<vmem>>, %arg4: memref<8x8xf32, #tpu.memory_space<vmem>>, %arg5: memref<8x8xf32, #tpu.memory_space<vmem>>, %arg6: memref<1x8xf32, #tpu.memory_space<vmem>>, %arg7: memref<8x8xf32, #tpu.memory_space<vmem>>, %arg8: memref<8x8xf32, #tpu.memory_space<vmem>>, %arg9: memref<64x8xf32, #tpu.memory_space<vmem>>) attributes {dimension_semantics = [#tpu.dimension_semantics<parallel>], iteration_bounds = array<i64: 1>, scalar_prefetch = 0 : i64, scratch_operands = 0 : i64, tpu.core_type = #tpu.core_type<tc>, window_params = [{transform_indices = @transform_0, window_bounds = array<i64: 8, 8>}, {transform_indices = @transform_1, window_bounds = array<i64: 8, 8>}, {transform_indices = @transform_2, window_bounds = array<i64: 64, 8>}, {pipeline_mode = #tpu.pipeline_mode<synchronous>, transform_indices = @transform_3, window_bounds = array<i64: 8, 8>}, {pipeline_mode = #tpu.pipeline_mode<synchronous>, transform_indices = @transform_4, window_bounds = array<i64: 8, 8>}, {pipeline_mode = #tpu.pipeline_mode<synchronous>, transform_indices = @transform_5, window_bounds = array<i64: 1, 8>}, {pipeline_mode = #tpu.pipeline_mode<synchronous>, transform_indices = @transform_6, window_bounds = array<i64: 8, 8>}, {transform_indices = @transform_7, window_bounds = array<i64: 8, 8>}, {transform_indices = @transform_8, window_bounds = array<i64: 64, 8>}]} {
    %c0 = arith.constant 0 : index
    %c0_0 = arith.constant 0 : index
    %0 = vector.load %arg4[%c0, %c0_0] : memref<8x8xf32, #tpu.memory_space<vmem>>, vector<8x8xf32>
    %c0_1 = arith.constant 0 : index
    %c0_2 = arith.constant 0 : index
    %1 = vector.load %arg1[%c0_1, %c0_2] : memref<8x8xf32, #tpu.memory_space<vmem>>, vector<8x8xf32>
    %cst = arith.constant dense<0.000000e+00> : vector<8x8xf32>
    %2 = tpu.matmul %1, %0, %cst {dimension_numbers = #tpu.dot_dimension_numbers<[1], [0], [0], [1], [0, 0, 1, 1], [], []>} : vector<8x8xf32>, vector<8x8xf32>, vector<8x8xf32> -> vector<8x8xf32>
    %c0_3 = arith.constant 0 : index
    %c0_4 = arith.constant 0 : index
    %3 = vector.load %arg2[%c0_3, %c0_4] : memref<8x8xf32, #tpu.memory_space<vmem>>, vector<8x8xf32>
    %c0_5 = arith.constant 0 : index
    %c0_6 = arith.constant 0 : index
    %4 = vector.load %arg5[%c0_5, %c0_6] : memref<8x8xf32, #tpu.memory_space<vmem>>, vector<8x8xf32>
    %cst_7 = arith.constant dense<0.000000e+00> : vector<8x8xf32>
    %5 = tpu.matmul %3, %4, %cst_7 {dimension_numbers = #tpu.dot_dimension_numbers<[1], [0], [0], [1], [0, 0, 1, 1], [], []>} : vector<8x8xf32>, vector<8x8xf32>, vector<8x8xf32> -> vector<8x8xf32>
    %6 = arith.addf %2, %5 : vector<8x8xf32>
    %c0_8 = arith.constant 0 : index
    %c0_9 = arith.constant 0 : index
    %7 = vector.load %arg6[%c0_8, %c0_9] : memref<1x8xf32, #tpu.memory_space<vmem>>, vector<1x8xf32>
    %8 = vector.broadcast %7 : vector<1x8xf32> to vector<8x8xf32>
    %9 = arith.addf %6, %8 : vector<8x8xf32>
    %c0_10 = arith.constant 0 : index
    %c0_11 = arith.constant 0 : index
    %10 = vector.load %arg8[%c0_10, %c0_11] : memref<8x8xf32, #tpu.memory_space<vmem>>, vector<8x8xf32>
    tpu.vector_store %arg8[%c0_10, %c0_11], %9 {strides = array<i32>} : memref<8x8xf32, #tpu.memory_space<vmem>>, vector<8x8xf32>,
    %c0_12 = arith.constant 0 : index
    %c0_13 = arith.constant 0 : index
    %11 = vector.load %arg3[%c0_12, %c0_13] : memref<64x8xf32, #tpu.memory_space<vmem>>, vector<64x8xf32>
    %cst_14 = arith.constant dense<0.000000e+00> : vector<64x8xf32>
    %12 = tpu.matmul %11, %0, %cst_14 {dimension_numbers = #tpu.dot_dimension_numbers<[1], [0], [0], [1], [0, 0, 1, 1], [], []>} : vector<64x8xf32>, vector<8x8xf32>, vector<64x8xf32> -> vector<64x8xf32>
    %cst_15 = arith.constant dense<0.000000e+00> : vector<64x8xf32>
    %13 = tpu.matmul %12, %0, %cst_15 {dimension_numbers = #tpu.dot_dimension_numbers<[1], [0], [0], [1], [0, 0, 1, 1], [], []>} : vector<64x8xf32>, vector<8x8xf32>, vector<64x8xf32> -> vector<64x8xf32>
    %14 = vector.shape_cast %12 : vector<64x8xf32> to vector<8x8x8xf32>
    %15 = vector.shape_cast %13 : vector<64x8xf32> to vector<8x8x8xf32>
    "tpu.trace_start"() <{level = 10 : i32, message = "tij,tjk->tik"}> : () -> ()
    %cst_16 = arith.constant dense<0.000000e+00> : vector<8x8x8xf32>
    %16 = tpu.matmul %14, %15, %cst_16 {dimension_numbers = #tpu.dot_dimension_numbers<[2], [1], [1], [2], [0, 0, 0, 1, 1, 2], [0], [0]>} : vector<8x8x8xf32>, vector<8x8x8xf32>, vector<8x8x8xf32> -> vector<8x8x8xf32>
    "tpu.trace_stop"() : () -> ()
    %c0_17 = arith.constant 0 : index
    %c0_18 = arith.constant 0 : index
    %17 = vector.load %arg7[%c0_17, %c0_18] : memref<8x8xf32, #tpu.memory_space<vmem>>, vector<8x8xf32>
    %18 = vector.shape_cast %17 : vector<8x8xf32> to vector<1x8x8xf32>
    %19 = vector.broadcast %18 : vector<1x8x8xf32> to vector<8x8x8xf32>
    %20 = arith.addf %16, %19 : vector<8x8x8xf32>
    %21 = vector.shape_cast %20 : vector<8x8x8xf32> to vector<64x8xf32>
    %c0_19 = arith.constant 0 : index
    %c0_20 = arith.constant 0 : index
    %22 = vector.load %arg9[%c0_19, %c0_20] : memref<64x8xf32, #tpu.memory_space<vmem>>, vector<64x8xf32>
    tpu.vector_store %arg9[%c0_19, %c0_20], %21 {strides = array<i32>} : memref<64x8xf32, #tpu.memory_space<vmem>>, vector<64x8xf32>,
    return
  }
  func.func @transform_0(%arg0: i32) -> (i32, i32) {
    %c0_i32 = arith.constant 0 : i32
    %c0_i32_0 = arith.constant 0 : i32
    return %arg0, %c0_i32 : i32, i32
  }
  func.func @transform_1(%arg0: i32) -> (i32, i32) {
    %c0_i32 = arith.constant 0 : i32
    %c0_i32_0 = arith.constant 0 : i32
    return %arg0, %c0_i32 : i32, i32
  }
  func.func @transform_2(%arg0: i32) -> (i32, i32) {
    %c0_i32 = arith.constant 0 : i32
    %c0_i32_0 = arith.constant 0 : i32
    return %arg0, %c0_i32 : i32, i32
  }
  func.func @transform_3(%arg0: i32) -> (i32, i32) {
    %c0_i32 = arith.constant 0 : i32
    %c0_i32_0 = arith.constant 0 : i32
    %c0_i32_1 = arith.constant 0 : i32
    return %c0_i32, %c0_i32_0 : i32, i32
  }
  func.func @transform_4(%arg0: i32) -> (i32, i32) {
    %c0_i32 = arith.constant 0 : i32
    %c0_i32_0 = arith.constant 0 : i32
    %c0_i32_1 = arith.constant 0 : i32
    return %c0_i32, %c0_i32_0 : i32, i32
  }
  func.func @transform_5(%arg0: i32) -> (i32, i32) {
    %c0_i32 = arith.constant 0 : i32
    %c0_i32_0 = arith.constant 0 : i32
    %c0_i32_1 = arith.constant 0 : i32
    return %c0_i32, %c0_i32_0 : i32, i32
  }
  func.func @transform_6(%arg0: i32) -> (i32, i32) {
    %c0_i32 = arith.constant 0 : i32
    %c0_i32_0 = arith.constant 0 : i32
    %c0_i32_1 = arith.constant 0 : i32
    return %c0_i32, %c0_i32_0 : i32, i32
  }
  func.func @transform_7(%arg0: i32) -> (i32, i32) {
    %c0_i32 = arith.constant 0 : i32
    %c0_i32_0 = arith.constant 0 : i32
    return %arg0, %c0_i32 : i32, i32
  }
  func.func @transform_8(%arg0: i32) -> (i32, i32) {
    %c0_i32 = arith.constant 0 : i32
    %c0_i32_0 = arith.constant 0 : i32
    return %arg0, %c0_i32 : i32, i32
  }
}

</mosaic_0001>

<llo_original>
// kernel: tpu_custom_call.1
$region0: #{tpu_custom_call.1}
  #allocation0 [shape = 'u32[]', space=smem, size = 0x4, offset = 0x4, fixed_abs, tag = 'smem constant byte address 0x4 - core index']
  #allocation1 [shape = 'u32[72,128]{1,0:T(1,128)}', space=vmem, size = 0x9000, scoped, tag = 'internal scratch']
  %s0 = inlined_call_operand.vmem [shape: f32[8,8], index: 0, kind: input, shape index: {}]
  %s1 = inlined_call_operand.vmem [shape: f32[8,8], index: 1, kind: input, shape index: {}]
  %s2 = inlined_call_operand.vmem [shape: f32[64,8], index: 2, kind: input, shape index: {}]
  %s3 = inlined_call_operand.vmem [shape: f32[8,8], index: 3, kind: input, shape index: {}]
  %s4 = inlined_call_operand.vmem [shape: f32[8,8], index: 4, kind: input, shape index: {}]
  %s5 = inlined_call_operand.vmem [shape: f32[1,8], index: 5, kind: input, shape index: {}]
  %s6 = inlined_call_operand.vmem [shape: f32[8,8], index: 6, kind: input, shape index: {}]
  %s7 = inlined_call_operand.hbm [shape: f32[8,8], index: 7, kind: output, shape index: {0}]
  %s8 = inlined_call_operand.vmem [shape: f32[64,8], index: 8, kind: output, shape index: {1}]
  %9 = xla_tuple %s7, %s8
  %s10 = sld [smem:[#allocation0]]
  $region46: #{tpu_custom_call.1} parent=0
    _
  %s12 = ssub.s32 1, %s10
  %s13 = scalar_select 0, %s12, %s10
  $region1: #{tpu_custom_call.1} parent=0
    #allocation2 [shape = 'u8[4096]{0}', space=vmem, size = 0x1000, scoped, tag = 'output window, operand 0, single buffered']
    #allocation3 [shape = 's32[1]{0}', space=sflag, size = 0x4, scoped, tag = 'scoped memory for tpu_custom_call.1']
    %14 = vsyncpa [#allocation3], 0
    // Predicated region
    $region2: #{tpu_custom_call.1} parent=1 // pred_check
      _
    $region3: #{tpu_custom_call.1} parent=1 // pred_check_branch
      %16 = sbr.rel (0) target = $region5
    $region4: #{tpu_custom_call.1} parent=1 // pred_region
      _
    $region5: #{tpu_custom_call.1} parent=1 // pred_fallthru
      _
    // Predicated region
    $region6: #{tpu_custom_call.1} parent=1 // pred_check
      _
    $region7: #{tpu_custom_call.1} parent=1 // pred_check_branch
      %18 = sbr.rel (0) target = $region9
    $region8: #{tpu_custom_call.1} parent=1 // pred_region
      _
    $region9: #{tpu_custom_call.1} parent=1 // pred_fallthru
      _
    // Predicated region
    $region10: #{tpu_custom_call.1} parent=1 // pred_check
      _
    $region11: #{tpu_custom_call.1} parent=1 // pred_check_branch
      %20 = sbr.rel (0) target = $region13
    $region12: #{tpu_custom_call.1} parent=1 // pred_region
      _
    $region13: #{tpu_custom_call.1} parent=1 // pred_fallthru
      _
    // Predicated region
    $region14: #{tpu_custom_call.1} parent=1 // pred_check
      _
    $region15: #{tpu_custom_call.1} parent=1 // pred_check_branch
      %22 = sbr.rel (0) target = $region17
    $region16: #{tpu_custom_call.1} parent=1 // pred_region
      _
    $region17: #{tpu_custom_call.1} parent=1 // pred_fallthru
      _
    // Predicated region
    $region18: #{tpu_custom_call.1} parent=1 // pred_check
      _
    $region19: #{tpu_custom_call.1} parent=1 // pred_check_branch
      %24 = sbr.rel (0) target = $region21
    $region20: #{tpu_custom_call.1} parent=1 // pred_region
      _
    $region21: #{tpu_custom_call.1} parent=1 // pred_fallthru
      _
    // Predicated region
    $region22: #{tpu_custom_call.1} parent=1 // pred_check
      _
    $region23: #{tpu_custom_call.1} parent=1 // pred_check_branch
      %26 = sbr.rel (0) target = $region25
    $region24: #{tpu_custom_call.1} parent=1 // pred_region
      _
    $region25: #{tpu_custom_call.1} parent=1 // pred_fallthru
      _
    // Predicated region
    $region26: #{tpu_custom_call.1} parent=1 // pred_check
      _
    $region27: #{tpu_custom_call.1} parent=1 // pred_check_branch
      %28 = sbr.rel (0) target = $region29
    $region28: #{tpu_custom_call.1} parent=1 // pred_region
      _
    $region29: #{tpu_custom_call.1} parent=1 // pred_fallthru
      _
    %v29 = vld [vmem:[%s3] sm:$0xff]
    %v30 = vld [vmem:[%s0] sm:$0xff]
    %v31 = vld [vmem:[%s1] sm:$0xff]
    %v32 = vld [vmem:[%s4] sm:$0xff]
    %vm33 = vcmask 64512
    %v35 = vsel %vm33, %v31, 0
    %37 = vmatpush.msra.mxu0 0.0
    %38 = vmatpush.msra.mxu0 0.0
    %39 = vmatpush.msra.mxu0 0.0
    %40 = vmatpush.msra.mxu0 0.0
    %41 = vmatpush.msra.mxu0 0.0
    %42 = vmatpush.msra.mxu0 0.0
    %43 = vmatpush.msra.mxu0 0.0
    %44 = vmatpush.msra.mxu0 0.0
    %45 = vmatpush.msra.mxu0 0.0
    %46 = vmatpush.msra.mxu0 0.0
    %47 = vmatpush.msra.mxu0 0.0
    %48 = vmatpush.msra.mxu0 0.0
    %49 = vmatpush.msra.mxu0 0.0
    %50 = vmatpush.msra.mxu0 0.0
    %51 = vmatpush.msra.mxu0 0.0
    %52 = vmatpush.msra.mxu0 %v32
    %53 = vmatmul.f32.gmra.mxu0 %v35
    %v54 = vpop.f32.mrf.mxu0
    %v55 = vadd.f32 0.0, %v54
    %56 = vdwg.mxu0
    %v58 = vsel %vm33, %v30, 0
    %60 = vmatpush.msra.mxu0 0.0
    %61 = vmatpush.msra.mxu0 0.0
    %62 = vmatpush.msra.mxu0 0.0
    %63 = vmatpush.msra.mxu0 0.0
    %64 = vmatpush.msra.mxu0 0.0
    %65 = vmatpush.msra.mxu0 0.0
    %66 = vmatpush.msra.mxu0 0.0
    %67 = vmatpush.msra.mxu0 0.0
    %68 = vmatpush.msra.mxu0 0.0
    %69 = vmatpush.msra.mxu0 0.0
    %70 = vmatpush.msra.mxu0 0.0
    %71 = vmatpush.msra.mxu0 0.0
    %72 = vmatpush.msra.mxu0 0.0
    %73 = vmatpush.msra.mxu0 0.0
    %74 = vmatpush.msra.mxu0 0.0
    %75 = vmatpush.msra.mxu0 %v29
    %76 = vmatmul.f32.gmra.mxu0 %v58
    %v77 = vpop.f32.mrf.mxu0
    %v78 = vadd.f32 %v55, %v77
    %79 = vdwg.mxu0
    %v80 = vld [vmem:[%s5] sm:$0x1]
    %v82 = vperm.slane %v80, 0
    %v84 = vadd.f32 %v78, %v82
    %85 = vst.msk [vmem:[#allocation2] sm:$0xff] %vm33, %v84
    %v86 = vld [vmem:[%s2] sm:$0xff]
    %v87 = vld [vmem:[%s2 + $0x8] sm:$0xff]
    %v88 = vld [vmem:[%s2 + $0x10] sm:$0xff]
    %v89 = vld [vmem:[%s2 + $0x18] sm:$0xff]
    %v90 = vld [vmem:[%s2 + $0x20] sm:$0xff]
    %v91 = vld [vmem:[%s2 + $0x28] sm:$0xff]
    %v92 = vld [vmem:[%s2 + $0x30] sm:$0xff]
    %v93 = vld [vmem:[%s2 + $0x38] sm:$0xff]
    %v95 = vsel %vm33, %v86, 0
    %v98 = vsel %vm33, %v87, 0
    %v101 = vsel %vm33, %v88, 0
    %v104 = vsel %vm33, %v89, 0
    %v107 = vsel %vm33, %v90, 0
    %v110 = vsel %vm33, %v91, 0
    %v113 = vsel %vm33, %v92, 0
    %v116 = vsel %vm33, %v93, 0
    %118 = vmatpush.msra.mxu0 0.0
    %119 = vmatpush.msra.mxu0 0.0
    %120 = vmatpush.msra.mxu0 0.0
    %121 = vmatpush.msra.mxu0 0.0
    %122 = vmatpush.msra.mxu0 0.0
    %123 = vmatpush.msra.mxu0 0.0
    %124 = vmatpush.msra.mxu0 0.0
    %125 = vmatpush.msra.mxu0 0.0
    %126 = vmatpush.msra.mxu0 0.0
    %127 = vmatpush.msra.mxu0 0.0
    %128 = vmatpush.msra.mxu0 0.0
    %129 = vmatpush.msra.mxu0 0.0
    %130 = vmatpush.msra.mxu0 0.0
    %131 = vmatpush.msra.mxu0 0.0
    %132 = vmatpush.msra.mxu0 0.0
    %133 = vmatpush.msra.mxu0 %v29
    %134 = vmatmul.f32.gmra.mxu0 %v95
    %v135 = vpop.f32.mrf.mxu0
    %v136 = vadd.f32 0.0, %v135
    %137 = vmatmul.f32.gmra.mxu0 %v98
    %v138 = vpop.f32.mrf.mxu0
    %v139 = vadd.f32 0.0, %v138
    %140 = vmatmul.f32.gmra.mxu0 %v101
    %v141 = vpop.f32.mrf.mxu0
    %v142 = vadd.f32 0.0, %v141
    %143 = vmatmul.f32.gmra.mxu0 %v104
    %v144 = vpop.f32.mrf.mxu0
    %v145 = vadd.f32 0.0, %v144
    %146 = vmatmul.f32.gmra.mxu0 %v107
    %v147 = vpop.f32.mrf.mxu0
    %v148 = vadd.f32 0.0, %v147
    %149 = vmatmul.f32.gmra.mxu0 %v110
    %v150 = vpop.f32.mrf.mxu0
    %v151 = vadd.f32 0.0, %v150
    %152 = vmatmul.f32.gmra.mxu0 %v113
    %v153 = vpop.f32.mrf.mxu0
    %v154 = vadd.f32 0.0, %v153
    %155 = vmatmul.f32.gmra.mxu0 %v116
    %v156 = vpop.f32.mrf.mxu0
    %v157 = vadd.f32 0.0, %v156
    %158 = vdwg.mxu0
    %v160 = vsel %vm33, %v136, 0
    %v163 = vsel %vm33, %v139, 0
    %v166 = vsel %vm33, %v142, 0
    %v169 = vsel %vm33, %v145, 0
    %v172 = vsel %vm33, %v148, 0
    %v175 = vsel %vm33, %v151, 0
    %v178 = vsel %vm33, %v154, 0
    %v181 = vsel %vm33, %v157, 0
    %183 = vmatpush.msra.mxu0 0.0
    %184 = vmatpush.msra.mxu0 0.0
    %185 = vmatpush.msra.mxu0 0.0
    %186 = vmatpush.msra.mxu0 0.0
    %187 = vmatpush.msra.mxu0 0.0
    %188 = vmatpush.msra.mxu0 0.0
    %189 = vmatpush.msra.mxu0 0.0
    %190 = vmatpush.msra.mxu0 0.0
    %191 = vmatpush.msra.mxu0 0.0
    %192 = vmatpush.msra.mxu0 0.0
    %193 = vmatpush.msra.mxu0 0.0
    %194 = vmatpush.msra.mxu0 0.0
    %195 = vmatpush.msra.mxu0 0.0
    %196 = vmatpush.msra.mxu0 0.0
    %197 = vmatpush.msra.mxu0 0.0
    %198 = vmatpush.msra.mxu0 %v29
    %199 = vmatmul.f32.gmra.mxu0 %v160
    %v200 = vpop.f32.mrf.mxu0
    %v201 = vadd.f32 0.0, %v200
    %202 = vmatmul.f32.gmra.mxu0 %v163
    %v203 = vpop.f32.mrf.mxu0
    %v204 = vadd.f32 0.0, %v203
    %205 = vmatmul.f32.gmra.mxu0 %v166
    %v206 = vpop.f32.mrf.mxu0
    %v207 = vadd.f32 0.0, %v206
    %208 = vmatmul.f32.gmra.mxu0 %v169
    %v209 = vpop.f32.mrf.mxu0
    %v210 = vadd.f32 0.0, %v209
    %211 = vmatmul.f32.gmra.mxu0 %v172
    %v212 = vpop.f32.mrf.mxu0
    %v213 = vadd.f32 0.0, %v212
    %214 = vmatmul.f32.gmra.mxu0 %v175
    %v215 = vpop.f32.mrf.mxu0
    %v216 = vadd.f32 0.0, %v215
    %217 = vmatmul.f32.gmra.mxu0 %v178
    %v218 = vpop.f32.mrf.mxu0
    %v219 = vadd.f32 0.0, %v218
    %220 = vmatmul.f32.gmra.mxu0 %v181
    %v221 = vpop.f32.mrf.mxu0
    %v222 = vadd.f32 0.0, %v221
    %223 = vdwg.mxu0
    %v224 = vld [vmem:[%s6] sm:$0xff]
    %225 = vmatpush.msra.mxu0 0.0
    %226 = vmatpush.msra.mxu0 0.0
    %227 = vmatpush.msra.mxu0 0.0
    %228 = vmatpush.msra.mxu0 0.0
    %229 = vmatpush.msra.mxu0 0.0
    %230 = vmatpush.msra.mxu0 0.0
    %231 = vmatpush.msra.mxu0 0.0
    %232 = vmatpush.msra.mxu0 0.0
    %233 = vmatpush.msra.mxu0 0.0
    %234 = vmatpush.msra.mxu0 0.0
    %235 = vmatpush.msra.mxu0 0.0
    %236 = vmatpush.msra.mxu0 0.0
    %237 = vmatpush.msra.mxu0 0.0
    %238 = vmatpush.msra.mxu0 0.0
    %239 = vmatpush.msra.mxu0 0.0
    %240 = vmatpush.msra.mxu0 %v201
    %241 = vmatmul.f32.gmra.mxu0 %v160
    %v242 = vpop.f32.mrf.mxu0
    %v243 = vadd.f32 %v224, %v242
    %244 = vdwg.mxu0
    %245 = vmatpush.msra.mxu0 0.0
    %246 = vmatpush.msra.mxu0 0.0
    %247 = vmatpush.msra.mxu0 0.0
    %248 = vmatpush.msra.mxu0 0.0
    %249 = vmatpush.msra.mxu0 0.0
    %250 = vmatpush.msra.mxu0 0.0
    %251 = vmatpush.msra.mxu0 0.0
    %252 = vmatpush.msra.mxu0 0.0
    %253 = vmatpush.msra.mxu0 0.0
    %254 = vmatpush.msra.mxu0 0.0
    %255 = vmatpush.msra.mxu0 0.0
    %256 = vmatpush.msra.mxu0 0.0
    %257 = vmatpush.msra.mxu0 0.0
    %258 = vmatpush.msra.mxu0 0.0
    %259 = vmatpush.msra.mxu0 0.0
    %260 = vmatpush.msra.mxu0 %v204
    %261 = vmatmul.f32.gmra.mxu0 %v163
    %v262 = vpop.f32.mrf.mxu0
    %v263 = vadd.f32 %v224, %v262
    %264 = vdwg.mxu0
    %265 = vmatpush.msra.mxu0 0.0
    %266 = vmatpush.msra.mxu0 0.0
    %267 = vmatpush.msra.mxu0 0.0
    %268 = vmatpush.msra.mxu0 0.0
    %269 = vmatpush.msra.mxu0 0.0
    %270 = vmatpush.msra.mxu0 0.0
    %271 = vmatpush.msra.mxu0 0.0
    %272 = vmatpush.msra.mxu0 0.0
    %273 = vmatpush.msra.mxu0 0.0
    %274 = vmatpush.msra.mxu0 0.0
    %275 = vmatpush.msra.mxu0 0.0
    %276 = vmatpush.msra.mxu0 0.0
    %277 = vmatpush.msra.mxu0 0.0
    %278 = vmatpush.msra.mxu0 0.0
    %279 = vmatpush.msra.mxu0 0.0
    %280 = vmatpush.msra.mxu0 %v207
    %281 = vmatmul.f32.gmra.mxu0 %v166
    %v282 = vpop.f32.mrf.mxu0
    %v283 = vadd.f32 %v224, %v282
    %284 = vdwg.mxu0
    %285 = vmatpush.msra.mxu0 0.0
    %286 = vmatpush.msra.mxu0 0.0
    %287 = vmatpush.msra.mxu0 0.0
    %288 = vmatpush.msra.mxu0 0.0
    %289 = vmatpush.msra.mxu0 0.0
    %290 = vmatpush.msra.mxu0 0.0
    %291 = vmatpush.msra.mxu0 0.0
    %292 = vmatpush.msra.mxu0 0.0
    %293 = vmatpush.msra.mxu0 0.0
    %294 = vmatpush.msra.mxu0 0.0
    %295 = vmatpush.msra.mxu0 0.0
    %296 = vmatpush.msra.mxu0 0.0
    %297 = vmatpush.msra.mxu0 0.0
    %298 = vmatpush.msra.mxu0 0.0
    %299 = vmatpush.msra.mxu0 0.0
    %300 = vmatpush.msra.mxu0 %v210
    %301 = vmatmul.f32.gmra.mxu0 %v169
    %v302 = vpop.f32.mrf.mxu0
    %v303 = vadd.f32 %v224, %v302
    %304 = vdwg.mxu0
    %305 = vmatpush.msra.mxu0 0.0
    %306 = vmatpush.msra.mxu0 0.0
    %307 = vmatpush.msra.mxu0 0.0
    %308 = vmatpush.msra.mxu0 0.0
    %309 = vmatpush.msra.mxu0 0.0
    %310 = vmatpush.msra.mxu0 0.0
    %311 = vmatpush.msra.mxu0 0.0
    %312 = vmatpush.msra.mxu0 0.0
    %313 = vmatpush.msra.mxu0 0.0
    %314 = vmatpush.msra.mxu0 0.0
    %315 = vmatpush.msra.mxu0 0.0
    %316 = vmatpush.msra.mxu0 0.0
    %317 = vmatpush.msra.mxu0 0.0
    %318 = vmatpush.msra.mxu0 0.0
    %319 = vmatpush.msra.mxu0 0.0
    %320 = vmatpush.msra.mxu0 %v213
    %321 = vmatmul.f32.gmra.mxu0 %v172
    %v322 = vpop.f32.mrf.mxu0
    %v323 = vadd.f32 %v224, %v322
    %324 = vdwg.mxu0
    %325 = vmatpush.msra.mxu0 0.0
    %326 = vmatpush.msra.mxu0 0.0
    %327 = vmatpush.msra.mxu0 0.0
    %328 = vmatpush.msra.mxu0 0.0
    %329 = vmatpush.msra.mxu0 0.0
    %330 = vmatpush.msra.mxu0 0.0
    %331 = vmatpush.msra.mxu0 0.0
    %332 = vmatpush.msra.mxu0 0.0
    %333 = vmatpush.msra.mxu0 0.0
    %334 = vmatpush.msra.mxu0 0.0
    %335 = vmatpush.msra.mxu0 0.0
    %336 = vmatpush.msra.mxu0 0.0
    %337 = vmatpush.msra.mxu0 0.0
    %338 = vmatpush.msra.mxu0 0.0
    %339 = vmatpush.msra.mxu0 0.0
    %340 = vmatpush.msra.mxu0 %v216
    %341 = vmatmul.f32.gmra.mxu0 %v175
    %v342 = vpop.f32.mrf.mxu0
    %v343 = vadd.f32 %v224, %v342
    %344 = vdwg.mxu0
    %345 = vmatpush.msra.mxu0 0.0
    %346 = vmatpush.msra.mxu0 0.0
    %347 = vmatpush.msra.mxu0 0.0
    %348 = vmatpush.msra.mxu0 0.0
    %349 = vmatpush.msra.mxu0 0.0
    %350 = vmatpush.msra.mxu0 0.0
    %351 = vmatpush.msra.mxu0 0.0
    %352 = vmatpush.msra.mxu0 0.0
    %353 = vmatpush.msra.mxu0 0.0
    %354 = vmatpush.msra.mxu0 0.0
    %355 = vmatpush.msra.mxu0 0.0
    %356 = vmatpush.msra.mxu0 0.0
    %357 = vmatpush.msra.mxu0 0.0
    %358 = vmatpush.msra.mxu0 0.0
    %359 = vmatpush.msra.mxu0 0.0
    %360 = vmatpush.msra.mxu0 %v219
    %361 = vmatmul.f32.gmra.mxu0 %v178
    %v362 = vpop.f32.mrf.mxu0
    %v363 = vadd.f32 %v224, %v362
    %364 = vdwg.mxu0
    %365 = vmatpush.msra.mxu0 0.0
    %366 = vmatpush.msra.mxu0 0.0
    %367 = vmatpush.msra.mxu0 0.0
    %368 = vmatpush.msra.mxu0 0.0
    %369 = vmatpush.msra.mxu0 0.0
    %370 = vmatpush.msra.mxu0 0.0
    %371 = vmatpush.msra.mxu0 0.0
    %372 = vmatpush.msra.mxu0 0.0
    %373 = vmatpush.msra.mxu0 0.0
    %374 = vmatpush.msra.mxu0 0.0
    %375 = vmatpush.msra.mxu0 0.0
    %376 = vmatpush.msra.mxu0 0.0
    %377 = vmatpush.msra.mxu0 0.0
    %378 = vmatpush.msra.mxu0 0.0
    %379 = vmatpush.msra.mxu0 0.0
    %380 = vmatpush.msra.mxu0 %v222
    %381 = vmatmul.f32.gmra.mxu0 %v181
    %v382 = vpop.f32.mrf.mxu0
    %v383 = vadd.f32 %v224, %v382
    %384 = vdwg.mxu0
    %385 = vst.msk [vmem:[%s8] sm:$0xff] %vm33, %v243
    %386 = vst.msk [vmem:[%s8 + $0x8] sm:$0xff] %vm33, %v263
    %387 = vst.msk [vmem:[%s8 + $0x10] sm:$0xff] %vm33, %v283
    %388 = vst.msk [vmem:[%s8 + $0x18] sm:$0xff] %vm33, %v303
    %389 = vst.msk [vmem:[%s8 + $0x20] sm:$0xff] %vm33, %v323
    %390 = vst.msk [vmem:[%s8 + $0x28] sm:$0xff] %vm33, %v343
    %391 = vst.msk [vmem:[%s8 + $0x30] sm:$0xff] %vm33, %v363
    %392 = vst.msk [vmem:[%s8 + $0x38] sm:$0xff] %vm33, %v383
    // Predicated region
    $region30: #{tpu_custom_call.1} parent=1 // pred_check
      _
    $region31: #{tpu_custom_call.1} parent=1 // pred_check_branch
      %394 = sbr.rel (0) target = $region33
    $region32: #{tpu_custom_call.1} parent=1 // pred_region
      %396 = vsyncadd [#allocation3], 0
      %s398 = sshll.u32 [#allocation2], 4
      %s399 = int_to_ptr.vmem [resolvable:$true] %s398
      %s400 = sshll.u32 %s7, 4
      %s401 = int_to_ptr.hbm [resolvable:$true] %s400
      %403 = dma.vmem_to_hbm [thread:$0]  %s399, 128, %s401, [#allocation3]
    $region33: #{tpu_custom_call.1} parent=1 // pred_fallthru
      _
    // Predicated region
    $region34: #{tpu_custom_call.1} parent=1 // pred_check
      _
    $region35: #{tpu_custom_call.1} parent=1 // pred_check_branch
      %405 = sbr.rel (0) target = $region37
    $region36: #{tpu_custom_call.1} parent=1 // pred_region
      _
    $region37: #{tpu_custom_call.1} parent=1 // pred_fallthru
      _
    // Predicated region
    $region38: #{tpu_custom_call.1} parent=1 // pred_check
      _
    $region39: #{tpu_custom_call.1} parent=1 // pred_check_branch
      %407 = sbr.rel (0) target = $region41
    $region40: #{tpu_custom_call.1} parent=1 // pred_region
      %409 = dma.done [#allocation3], 128
    $region41: #{tpu_custom_call.1} parent=1 // pred_fallthru
      _
    // Predicated region
    $region42: #{tpu_custom_call.1} parent=1 // pred_check
      _
    $region43: #{tpu_custom_call.1} parent=1 // pred_check_branch
      %411 = sbr.rel (0) target = $region45
    $region44: #{tpu_custom_call.1} parent=1 // pred_region
      _
    $region45: #{tpu_custom_call.1} parent=1 // pred_fallthru
      _
    %412 = vsyncpa [#allocation3], 1

</llo_original>
